<compile_context>
chip_gen: v6e
topology: v6e:2x2x1
jax: 0.10.0
libtpu: 0.0.40
codegen_flags: <defaults>
</compile_context>

<pallas_src>
import jax
import jax.numpy as jnp
from jax.experimental import pallas as pl
from jax.experimental.pallas import tpu as pltpu


def _elu(x):
    # ELU, alpha=1.0 (PyTorch default). Clamp the exp argument so the
    # not-taken branch never produces inf.
    return jnp.where(x > 0, x, jnp.exp(jnp.minimum(x, 0.0)) - 1.0)


def critic_kernel(xt_ref, w1t_ref, w2t_ref, b2_ref, wv_ref, out_ref):
    xt = xt_ref[...]                       # (8, TB) rows: [s0, s1, a0, 1, 0, 0, 0, 0]

    # Layer 1 (fc_state/fc_action + concat + biases, fused): MXU (64,8)@(8,TB).
    h1 = _elu(jnp.dot(w1t_ref[...], xt,
                      preferred_element_type=jnp.float32))            # (64, TB)

    # Layer 2 (fc): MXU (128,64)@(64,TB) in bf16, f32 accumulate; the bias is a
    # (128,1)->(128,TB) lane broadcast done once per tile.
    pre2 = jnp.dot(w2t_ref[...], h1.astype(jnp.bfloat16),
                   preferred_element_type=jnp.float32) + b2_ref[...]
    h2 = _elu(pre2)                                                    # (128, TB)

    # Layer 3 (fc_value, no bias): MXU (8,128)@(128,TB); only row 0 of the
    # padded weight is real, so the output row is lane-dense (1, TB).
    q8 = jnp.dot(wv_ref[...], h2, preferred_element_type=jnp.float32)  # (8, TB)
    out_ref[...] = q8[0:1, :]


def _round_up(n, m):
    return ((n + m - 1) // m) * m


def _choose_tile(B, max_tile_b=4096):
    """Batch (lane) tile: multiple of 128, large enough to amortize per-grid-
    step overhead, small enough to (a) keep the padded tail small and (b) give
    >= 2 grid steps for v7x megacore whenever the batch allows it."""
    max_tile_b = max(128, (max_tile_b // 128) * 128)
    b128 = _round_up(B, 128)
    if b128 <= 128:
        return 128
    if b128 <= max_tile_b:
        return _round_up(pl.cdiv(B, 2), 128)        # two balanced tiles
    cands = [c for c in (4096, 2048, 1024, 512) if c <= max_tile_b] or [max_tile_b]
    return min(cands, key=lambda c: (_round_up(B, c) - B, -c))  # least padding, then biggest


def critic_forward(state, action, params, *, max_tile_b=4096):
    """state: (B,2), action: (B,1) -> (B,1) float32 Q-values."""
    w1t, w2t, b2, wv8 = params
    B = state.shape[0]

    tb = _choose_tile(B, max_tile_b)
    b_pad = _round_up(B, tb)
    n_tiles = b_pad // tb

    # Transposed, K-padded input slab (8, B_pad): rows [s0, s1, a0, 1, 0,0,0,0].
    # The constant-1 row carries the layer-1 biases through the MXU dot.  The
    # padded columns (>= B) are all-zero, stay finite through ELU, and are
    # sliced off after the kernel.
    x8 = jnp.concatenate(
        [state.astype(jnp.float32), action.astype(jnp.float32),
         jnp.ones((B, 1), jnp.float32), jnp.zeros((B, 4), jnp.float32)],
        axis=1)                                                      # (B, 8)
    xT = jnp.pad(x8.T, ((0, 0), (0, b_pad - B)))                     # (8, B_pad)

    out = pl.pallas_call(
        critic_kernel,
        out_shape=jax.ShapeDtypeStruct((1, b_pad), jnp.float32),
        grid=(n_tiles,),
        in_specs=[
            pl.BlockSpec((8, tb), lambda i: (0, i)),      # xT tile (pipelined)
            pl.BlockSpec((64, 8), lambda i: (0, 0)),      # fused W1^T (+bias col), resident
            pl.BlockSpec((128, 64), lambda i: (0, 0)),    # fc.weight (bf16), resident
            pl.BlockSpec((128, 1), lambda i: (0, 0)),     # fc.bias as column
            pl.BlockSpec((8, 128), lambda i: (0, 0)),     # fc_value.weight, row 0
        ],
        out_specs=pl.BlockSpec((1, tb), lambda i: (0, i)),
        compiler_params=pltpu.CompilerParams(
            dimension_semantics=("parallel",)),
    )(xT, w1t, w2t, b2, wv8)

    return out[0, :B].reshape(B, 1)


# ---------------------------------------------------------------------------
# Parameter construction matching the PyTorch module's init.
# ---------------------------------------------------------------------------

def xavier_normal(key, shape):
    # shape is (fan_out, fan_in) like PyTorch nn.Linear.weight
    fan_out, fan_in = shape
    std = (2.0 / (fan_in + fan_out)) ** 0.5
    return std * jax.random.normal(key, shape, dtype=jnp.float32)


def linear_bias(key, fan_in, fan_out):
    # PyTorch default Linear bias init: U(-1/sqrt(fan_in), 1/sqrt(fan_in))
    bound = 1.0 / (fan_in ** 0.5)
    return jax.random.uniform(key, (fan_out,), jnp.float32, -bound, bound)


def make_raw_params(key):
    ks = jax.random.split(key, 7)
    w_state = xavier_normal(ks[0], (32, 2))     # fc_state.weight
    b_state = linear_bias(ks[1], 2, 32)         # fc_state.bias
    w_action = xavier_normal(ks[2], (32, 1))    # fc_action.weight
    b_action = linear_bias(ks[3], 1, 32)        # fc_action.bias
    w_fc = xavier_normal(ks[4], (128, 64))      # fc.weight
    b_fc = linear_bias(ks[5], 64, 128)          # fc.bias
    w_value = xavier_normal(ks[6], (1, 128))    # fc_value.weight (no bias)
    return w_state, b_state, w_action, b_action, w_fc, b_fc, w_value


def pack_params(raw):
    w_state, b_state, w_action, b_action, w_fc, b_fc, w_value = raw
    # Fused, transposed, K-padded layer-1 weight over input rows
    # [s0, s1, a0, 1, 0, 0, 0, 0]:
    #   output rows 0:32 <- state path, rows 32:64 <- action path
    #   (matches torch.cat([out_s, out_a], dim=1)); column 3 holds the biases
    #   (multiplied by the constant-1 input row -> bias folded into the MXU).
    w1t = jnp.zeros((64, 8), jnp.float32)
    w1t = w1t.at[0:32, 0:2].set(w_state)          # (32, 2)
    w1t = w1t.at[32:64, 2:3].set(w_action)        # (32, 1)
    w1t = w1t.at[0:32, 3].set(b_state)
    w1t = w1t.at[32:64, 3].set(b_action)
    w2t = w_fc.astype(jnp.bfloat16)               # (128, 64): h2T = W_fc @ h1T
    b2 = b_fc.reshape(128, 1).astype(jnp.float32)
    wv8 = jnp.zeros((8, 128), jnp.float32).at[0, :].set(w_value[0])
    return w1t, w2t, b2, wv8


if __name__ == "__main__":
    key = jax.random.PRNGKey(0)
    k_params, k_state, k_action = jax.random.split(key, 3)

    # Note: a standalone pallas_call is overhead-dominated at tiny B; this
    # kernel targets large training/eval batches.  B=8 is a correctness demo.
    B = 8
    state = jax.random.normal(k_state, (B, 2), dtype=jnp.float32)
    action = jax.random.normal(k_action, (B, 1), dtype=jnp.float32)

    raw = make_raw_params(k_params)
    params = pack_params(raw)

    out = critic_forward(state, action, params)
    out = jax.block_until_ready(out)

    # Plain-JAX f32 reference of the original (unfused) module.
    w_state, b_state, w_action, b_action, w_fc, b_fc, w_value = raw

    def elu(v):
        return jnp.where(v > 0, v, jnp.exp(jnp.minimum(v, 0.0)) - 1.0)

    ref_s = elu(state @ w_state.T + b_state)
    ref_a = elu(action @ w_action.T + b_action)
    ref_h = elu(jnp.concatenate([ref_s, ref_a], axis=1) @ w_fc.T + b_fc)
    ref = ref_h @ w_value.T

    assert out.shape == (B, 1)
    max_err = jnp.max(jnp.abs(out - ref))
    # Tolerance relaxed vs the pure-f32 version: layer 2 runs in bf16 on the
    # MXU (f32 accumulation), an explicit precision decision from the review.
    assert jnp.allclose(out, ref, atol=3e-2, rtol=3e-2), f"max abs err {max_err}"

    print("KERNEL_OK")
</pallas_src>

<mosaic_0001>
module attributes {stable_mosaic.version = 11 : i64} {
  func.func @critic_kernel(%arg0: i32, %arg1: memref<8x128xf32, #tpu.memory_space<vmem>>, %arg2: memref<64x8xf32, #tpu.memory_space<vmem>>, %arg3: memref<128x64xbf16, #tpu.memory_space<vmem>>, %arg4: memref<128x1xf32, #tpu.memory_space<vmem>>, %arg5: memref<8x128xf32, #tpu.memory_space<vmem>>, %arg6: memref<1x128xf32, #tpu.memory_space<vmem>>) attributes {dimension_semantics = [#tpu.dimension_semantics<parallel>], iteration_bounds = array<i64: 1>, scalar_prefetch = 0 : i64, scratch_operands = 0 : i64, tpu.core_type = #tpu.core_type<tc>, window_params = [{transform_indices = @transform_0, window_bounds = array<i64: 8, 128>}, {pipeline_mode = #tpu.pipeline_mode<synchronous>, transform_indices = @transform_1, window_bounds = array<i64: 64, 8>}, {pipeline_mode = #tpu.pipeline_mode<synchronous>, transform_indices = @transform_2, window_bounds = array<i64: 128, 64>}, {pipeline_mode = #tpu.pipeline_mode<synchronous>, transform_indices = @transform_3, window_bounds = array<i64: 128, 1>}, {pipeline_mode = #tpu.pipeline_mode<synchronous>, transform_indices = @transform_4, window_bounds = array<i64: 8, 128>}, {transform_indices = @transform_5, window_bounds = array<i64: 1, 128>}]} {
    %c0 = arith.constant 0 : index
    %c0_0 = arith.constant 0 : index
    %0 = vector.load %arg1[%c0, %c0_0] : memref<8x128xf32, #tpu.memory_space<vmem>>, vector<8x128xf32>
    %c0_1 = arith.constant 0 : index
    %c0_2 = arith.constant 0 : index
    %1 = vector.load %arg2[%c0_1, %c0_2] : memref<64x8xf32, #tpu.memory_space<vmem>>, vector<64x8xf32>
    %cst = arith.constant dense<0.000000e+00> : vector<64x128xf32>
    %2 = tpu.matmul %1, %0, %cst {dimension_numbers = #tpu.dot_dimension_numbers<[1], [0], [0], [1], [0, 0, 1, 1], [], []>} : vector<64x8xf32>, vector<8x128xf32>, vector<64x128xf32> -> vector<64x128xf32>
    %cst_3 = arith.constant 0.000000e+00 : f32
    %3 = vector.broadcast %cst_3 : f32 to vector<64x128xf32>
    %4 = arith.cmpf ogt, %2, %3 : vector<64x128xf32>
    %cst_4 = arith.constant 0.000000e+00 : f32
    %5 = vector.broadcast %cst_4 : f32 to vector<64x128xf32>
    %6 = arith.minimumf %2, %5 : vector<64x128xf32>
    %7 = math.exp %6 : vector<64x128xf32>
    %cst_5 = arith.constant 1.000000e+00 : f32
    %8 = vector.broadcast %cst_5 : f32 to vector<64x128xf32>
    %9 = arith.subf %7, %8 : vector<64x128xf32>
    %10 = arith.select %4, %2, %9 : vector<64x128xi1>, vector<64x128xf32>
    %c0_6 = arith.constant 0 : index
    %c0_7 = arith.constant 0 : index
    %11 = vector.load %arg3[%c0_6, %c0_7] : memref<128x64xbf16, #tpu.memory_space<vmem>>, vector<128x64xbf16>
    %12 = arith.truncf %10 : vector<64x128xf32> to vector<64x128xbf16>
    %cst_8 = arith.constant dense<0.000000e+00> : vector<128x128xf32>
    %13 = tpu.matmul %11, %12, %cst_8 {dimension_numbers = #tpu.dot_dimension_numbers<[1], [0], [0], [1], [0, 0, 1, 1], [], []>} : vector<128x64xbf16>, vector<64x128xbf16>, vector<128x128xf32> -> vector<128x128xf32>
    %c0_9 = arith.constant 0 : index
    %c0_10 = arith.constant 0 : index
    %14 = vector.load %arg4[%c0_9, %c0_10] : memref<128x1xf32, #tpu.memory_space<vmem>>, vector<128x1xf32>
    %15 = vector.broadcast %14 : vector<128x1xf32> to vector<128x128xf32>
    %16 = arith.addf %13, %15 : vector<128x128xf32>
    %cst_11 = arith.constant 0.000000e+00 : f32
    %17 = vector.broadcast %cst_11 : f32 to vector<128x128xf32>
    %18 = arith.cmpf ogt, %16, %17 : vector<128x128xf32>
    %cst_12 = arith.constant 0.000000e+00 : f32
    %19 = vector.broadcast %cst_12 : f32 to vector<128x128xf32>
    %20 = arith.minimumf %16, %19 : vector<128x128xf32>
    %21 = math.exp %20 : vector<128x128xf32>
    %cst_13 = arith.constant 1.000000e+00 : f32
    %22 = vector.broadcast %cst_13 : f32 to vector<128x128xf32>
    %23 = arith.subf %21, %22 : vector<128x128xf32>
    %24 = arith.select %18, %16, %23 : vector<128x128xi1>, vector<128x128xf32>
    %c0_14 = arith.constant 0 : index
    %c0_15 = arith.constant 0 : index
    %25 = vector.load %arg5[%c0_14, %c0_15] : memref<8x128xf32, #tpu.memory_space<vmem>>, vector<8x128xf32>
    %cst_16 = arith.constant dense<0.000000e+00> : vector<8x128xf32>
    %26 = tpu.matmul %25, %24, %cst_16 {dimension_numbers = #tpu.dot_dimension_numbers<[1], [0], [0], [1], [0, 0, 1, 1], [], []>} : vector<8x128xf32>, vector<128x128xf32>, vector<8x128xf32> -> vector<8x128xf32>
    %27 = vector.extract_strided_slice %26 {offsets = [0, 0], sizes = [1, 128], strides = [1, 1]} : vector<8x128xf32> to vector<1x128xf32>
    %c0_17 = arith.constant 0 : index
    %c0_18 = arith.constant 0 : index
    %28 = vector.load %arg6[%c0_17, %c0_18] : memref<1x128xf32, #tpu.memory_space<vmem>>, vector<1x128xf32>
    tpu.vector_store %arg6[%c0_17, %c0_18], %27 {strides = array<i32>} : memref<1x128xf32, #tpu.memory_space<vmem>>, vector<1x128xf32>,
    return
  }
  func.func @transform_0(%arg0: i32) -> (i32, i32) {
    %c0_i32 = arith.constant 0 : i32
    %c0_i32_0 = arith.constant 0 : i32
    return %c0_i32, %arg0 : i32, i32
  }
  func.func @transform_1(%arg0: i32) -> (i32, i32) {
    %c0_i32 = arith.constant 0 : i32
    %c0_i32_0 = arith.constant 0 : i32
    %c0_i32_1 = arith.constant 0 : i32
    return %c0_i32, %c0_i32_0 : i32, i32
  }
  func.func @transform_2(%arg0: i32) -> (i32, i32) {
    %c0_i32 = arith.constant 0 : i32
    %c0_i32_0 = arith.constant 0 : i32
    %c0_i32_1 = arith.constant 0 : i32
    return %c0_i32, %c0_i32_0 : i32, i32
  }
  func.func @transform_3(%arg0: i32) -> (i32, i32) {
    %c0_i32 = arith.constant 0 : i32
    %c0_i32_0 = arith.constant 0 : i32
    %c0_i32_1 = arith.constant 0 : i32
    return %c0_i32, %c0_i32_0 : i32, i32
  }
  func.func @transform_4(%arg0: i32) -> (i32, i32) {
    %c0_i32 = arith.constant 0 : i32
    %c0_i32_0 = arith.constant 0 : i32
    %c0_i32_1 = arith.constant 0 : i32
    return %c0_i32, %c0_i32_0 : i32, i32
  }
  func.func @transform_5(%arg0: i32) -> (i32, i32) {
    %c0_i32 = arith.constant 0 : i32
    %c0_i32_0 = arith.constant 0 : i32
    return %c0_i32, %arg0 : i32, i32
  }
}

</mosaic_0001>

<llo_original>
// kernel: tpu_custom_call.1
$region0: #{tpu_custom_call.1}
  #allocation0 [shape = 'u32[]', space=smem, size = 0x4, offset = 0x4, fixed_abs, tag = 'smem constant byte address 0x4 - core index']
  #allocation1 [shape = 'u32[144,128]{1,0:T(1,128)}', space=vmem, size = 0x12000, scoped, tag = 'internal scratch']
  %s0 = inlined_call_operand.vmem [shape: f32[8,128], index: 0, kind: input, shape index: {}]
  %s1 = inlined_call_operand.vmem [shape: f32[64,8], index: 1, kind: input, shape index: {}]
  %s2 = inlined_call_operand.vmem [shape: bf16[128,64], index: 2, kind: input, shape index: {}]
  %s3 = inlined_call_operand.vmem [shape: f32[128,1], index: 3, kind: input, shape index: {}]
  %s4 = inlined_call_operand.vmem [shape: f32[8,128], index: 4, kind: input, shape index: {}]
  %s5 = inlined_call_operand.hbm [shape: f32[1,128], index: 5, kind: output, shape index: {}]
  %s6 = sld [smem:[#allocation0]]
  $region30: #{tpu_custom_call.1} parent=0
    _
  %s8 = ssub.s32 1, %s6
  %s9 = scalar_select 0, %s8, %s6
  $region1: #{tpu_custom_call.1} parent=0
    #allocation2 [shape = 'u8[512]{0}', space=vmem, size = 0x400, scoped, tag = 'output window, operand 0, single buffered']
    #allocation3 [shape = 's32[1]{0}', space=sflag, size = 0x4, scoped, tag = 'scoped memory for tpu_custom_call.1']
    %10 = vsyncpa [#allocation3], 0
    // Predicated region
    $region2: #{tpu_custom_call.1} parent=1 // pred_check
      _
    $region3: #{tpu_custom_call.1} parent=1 // pred_check_branch
      %12 = sbr.rel (0) target = $region5
    $region4: #{tpu_custom_call.1} parent=1 // pred_region
      _
    $region5: #{tpu_custom_call.1} parent=1 // pred_fallthru
      _
    // Predicated region
    $region6: #{tpu_custom_call.1} parent=1 // pred_check
      _
    $region7: #{tpu_custom_call.1} parent=1 // pred_check_branch
      %14 = sbr.rel (0) target = $region9
    $region8: #{tpu_custom_call.1} parent=1 // pred_region
      _
    $region9: #{tpu_custom_call.1} parent=1 // pred_fallthru
      _
    // Predicated region
    $region10: #{tpu_custom_call.1} parent=1 // pred_check
      _
    $region11: #{tpu_custom_call.1} parent=1 // pred_check_branch
      %16 = sbr.rel (0) target = $region13
    $region12: #{tpu_custom_call.1} parent=1 // pred_region
      _
    $region13: #{tpu_custom_call.1} parent=1 // pred_fallthru
      _
    // Predicated region
    $region14: #{tpu_custom_call.1} parent=1 // pred_check
      _
    $region15: #{tpu_custom_call.1} parent=1 // pred_check_branch
      %18 = sbr.rel (0) target = $region17
    $region16: #{tpu_custom_call.1} parent=1 // pred_region
      _
    $region17: #{tpu_custom_call.1} parent=1 // pred_fallthru
      _
    // Predicated region
    $region18: #{tpu_custom_call.1} parent=1 // pred_check
      _
    $region19: #{tpu_custom_call.1} parent=1 // pred_check_branch
      %20 = sbr.rel (0) target = $region21
    $region20: #{tpu_custom_call.1} parent=1 // pred_region
      _
    $region21: #{tpu_custom_call.1} parent=1 // pred_fallthru
      _
    %v22 = vld [vmem:[%s0] sm:$0xff]
    %v23 = vld [vmem:[%s1] sm:$0xff]
    %v24 = vld [vmem:[%s1 + $0x8] sm:$0xff]
    %v25 = vld [vmem:[%s1 + $0x10] sm:$0xff]
    %v26 = vld [vmem:[%s1 + $0x18] sm:$0xff]
    %v27 = vld [vmem:[%s1 + $0x20] sm:$0xff]
    %v28 = vld [vmem:[%s1 + $0x28] sm:$0xff]
    %v29 = vld [vmem:[%s1 + $0x30] sm:$0xff]
    %v30 = vld [vmem:[%s1 + $0x38] sm:$0xff]
    %vm31 = vcmask 64512
    %v33 = vsel %vm31, %v23, 0
    %v36 = vsel %vm31, %v24, 0
    %v39 = vsel %vm31, %v25, 0
    %v42 = vsel %vm31, %v26, 0
    %v45 = vsel %vm31, %v27, 0
    %v48 = vsel %vm31, %v28, 0
    %v51 = vsel %vm31, %v29, 0
    %v54 = vsel %vm31, %v30, 0
    %56 = vmatprep.subr.mxu0 0.0
    %57 = vmatpush1.msra.mxu0 0.0
    %58 = vmatprep.subr.mxu0 0.0
    %59 = vmatpush1.msra.mxu0 0.0
    %60 = vmatprep.subr.mxu0 0.0
    %61 = vmatpush1.msra.mxu0 0.0
    %62 = vmatprep.subr.mxu0 0.0
    %63 = vmatpush1.msra.mxu0 0.0
    %64 = vmatprep.subr.mxu0 0.0
    %65 = vmatpush1.msra.mxu0 0.0
    %66 = vmatprep.subr.mxu0 0.0
    %67 = vmatpush1.msra.mxu0 0.0
    %68 = vmatprep.subr.mxu0 0.0
    %69 = vmatpush1.msra.mxu0 0.0
    %70 = vmatprep.subr.mxu0 0.0
    %71 = vmatpush1.msra.mxu0 0.0
    %72 = vmatprep.subr.mxu0 0.0
    %73 = vmatpush1.msra.mxu0 0.0
    %74 = vmatprep.subr.mxu0 0.0
    %75 = vmatpush1.msra.mxu0 0.0
    %76 = vmatprep.subr.mxu0 0.0
    %77 = vmatpush1.msra.mxu0 0.0
    %78 = vmatprep.subr.mxu0 0.0
    %79 = vmatpush1.msra.mxu0 0.0
    %80 = vmatprep.subr.mxu0 0.0
    %81 = vmatpush1.msra.mxu0 0.0
    %82 = vmatprep.subr.mxu0 0.0
    %83 = vmatpush1.msra.mxu0 0.0
    %84 = vmatprep.subr.mxu0 0.0
    %85 = vmatpush1.msra.mxu0 0.0
    %86 = vmatprep.subr.mxu0 0.0
    %87 = vmatpush1.msra.mxu0 %v22
    %88 = vmatprep.subr.mxu0 0.0
    %89 = vmatpush2.msra.mxu0 0.0
    %90 = vmatprep.subr.mxu0 0.0
    %91 = vmatpush2.msra.mxu0 0.0
    %92 = vmatprep.subr.mxu0 0.0
    %93 = vmatpush2.msra.mxu0 0.0
    %94 = vmatprep.subr.mxu0 0.0
    %95 = vmatpush2.msra.mxu0 0.0
    %96 = vmatprep.subr.mxu0 0.0
    %97 = vmatpush2.msra.mxu0 0.0
    %98 = vmatprep.subr.mxu0 0.0
    %99 = vmatpush2.msra.mxu0 0.0
    %100 = vmatprep.subr.mxu0 0.0
    %101 = vmatpush2.msra.mxu0 0.0
    %102 = vmatprep.subr.mxu0 0.0
    %103 = vmatpush2.msra.mxu0 0.0
    %104 = vmatprep.subr.mxu0 0.0
    %105 = vmatpush2.msra.mxu0 0.0
    %106 = vmatprep.subr.mxu0 0.0
    %107 = vmatpush2.msra.mxu0 0.0
    %108 = vmatprep.subr.mxu0 0.0
    %109 = vmatpush2.msra.mxu0 0.0
    %110 = vmatprep.subr.mxu0 0.0
    %111 = vmatpush2.msra.mxu0 0.0
    %112 = vmatprep.subr.mxu0 0.0
    %113 = vmatpush2.msra.mxu0 0.0
    %114 = vmatprep.subr.mxu0 0.0
    %115 = vmatpush2.msra.mxu0 0.0
    %116 = vmatprep.subr.mxu0 0.0
    %117 = vmatpush2.msra.mxu0 0.0
    %118 = vmatprep.subr.mxu0 0.0
    %119 = vmatpush2.msra.mxu0 0.0
    %120 = vmatprep.mubr.f32.mxu0 0.0
    %121 = vmatmul.mubr.f32.gmra.mxu0 %v33
    %v122 = vpop.f32.mrf.mxu0
    %v123 = vadd.f32 0.0, %v122
    %v124 = vpop.f32.mrf.mxu0
    %125 = vmatprep.mubr.f32.mxu0 0.0
    %126 = vmatmul.mubr.f32.gmra.mxu0 %v36
    %v127 = vpop.f32.mrf.mxu0
    %v128 = vadd.f32 0.0, %v127
    %v129 = vpop.f32.mrf.mxu0
    %130 = vmatprep.mubr.f32.mxu0 0.0
    %131 = vmatmul.mubr.f32.gmra.mxu0 %v39
    %v132 = vpop.f32.mrf.mxu0
    %v133 = vadd.f32 0.0, %v132
    %v134 = vpop.f32.mrf.mxu0
    %135 = vmatprep.mubr.f32.mxu0 0.0
    %136 = vmatmul.mubr.f32.gmra.mxu0 %v42
    %v137 = vpop.f32.mrf.mxu0
    %v138 = vadd.f32 0.0, %v137
    %v139 = vpop.f32.mrf.mxu0
    %140 = vmatprep.mubr.f32.mxu0 0.0
    %141 = vmatmul.mubr.f32.gmra.mxu0 %v45
    %v142 = vpop.f32.mrf.mxu0
    %v143 = vadd.f32 0.0, %v142
    %v144 = vpop.f32.mrf.mxu0
    %145 = vmatprep.mubr.f32.mxu0 0.0
    %146 = vmatmul.mubr.f32.gmra.mxu0 %v48
    %v147 = vpop.f32.mrf.mxu0
    %v148 = vadd.f32 0.0, %v147
    %v149 = vpop.f32.mrf.mxu0
    %150 = vmatprep.mubr.f32.mxu0 0.0
    %151 = vmatmul.mubr.f32.gmra.mxu0 %v51
    %v152 = vpop.f32.mrf.mxu0
    %v153 = vadd.f32 0.0, %v152
    %v154 = vpop.f32.mrf.mxu0
    %155 = vmatprep.mubr.f32.mxu0 0.0
    %156 = vmatmul.mubr.f32.gmra.mxu0 %v54
    %v157 = vpop.f32.mrf.mxu0
    %v158 = vadd.f32 0.0, %v157
    %v159 = vpop.f32.mrf.mxu0
    %160 = vdwg.mxu0
    %vm161 = vcmp.gt.f32.partialorder %v123, 0.0
    %vm162 = vcmp.gt.f32.partialorder %v128, 0.0
    %vm163 = vcmp.gt.f32.partialorder %v133, 0.0
    %vm164 = vcmp.gt.f32.partialorder %v138, 0.0
    %vm165 = vcmp.gt.f32.partialorder %v143, 0.0
    %vm166 = vcmp.gt.f32.partialorder %v148, 0.0
    %vm167 = vcmp.gt.f32.partialorder %v153, 0.0
    %vm168 = vcmp.gt.f32.partialorder %v158, 0.0
    %v169 = vmin.f32 %v123, 0.0
    %v170 = vmin.f32 %v128, 0.0
    %v171 = vmin.f32 %v133, 0.0
    %v172 = vmin.f32 %v138, 0.0
    %v173 = vmin.f32 %v143, 0.0
    %v174 = vmin.f32 %v148, 0.0
    %v175 = vmin.f32 %v153, 0.0
    %v176 = vmin.f32 %v158, 0.0
    %v177 = vmul.f32 %v169, 1.442695
    %v178 = vpow.pop %v177
    %v179 = vmul.f32 %v170, 1.442695
    %v180 = vpow.pop %v179
    %v181 = vmul.f32 %v171, 1.442695
    %v182 = vpow.pop %v181
    %v183 = vmul.f32 %v172, 1.442695
    %v184 = vpow.pop %v183
    %v185 = vmul.f32 %v173, 1.442695
    %v186 = vpow.pop %v185
    %v187 = vmul.f32 %v174, 1.442695
    %v188 = vpow.pop %v187
    %v189 = vmul.f32 %v175, 1.442695
    %v190 = vpow.pop %v189
    %v191 = vmul.f32 %v176, 1.442695
    %v192 = vpow.pop %v191
    %v193 = vsub.f32 %v178, 1.0
    %v194 = vsub.f32 %v180, 1.0
    %v195 = vsub.f32 %v182, 1.0
    %v196 = vsub.f32 %v184, 1.0
    %v197 = vsub.f32 %v186, 1.0
    %v198 = vsub.f32 %v188, 1.0
    %v199 = vsub.f32 %v190, 1.0
    %v200 = vsub.f32 %v192, 1.0
    %v201 = vsel %vm161, %v123, %v193
    %v202 = vsel %vm162, %v128, %v194
    %v203 = vsel %vm163, %v133, %v195
    %v204 = vsel %vm164, %v138, %v196
    %v205 = vsel %vm165, %v143, %v197
    %v206 = vsel %vm166, %v148, %v198
    %v207 = vsel %vm167, %v153, %v199
    %v208 = vsel %vm168, %v158, %v200
    %v209 = vld [vmem:[%s2] sm:$0xf]
    %v210 = vld [vmem:[%s2 + $0x4] sm:$0xf]
    %v211 = vld [vmem:[%s2 + $0x8] sm:$0xf]
    %v212 = vld [vmem:[%s2 + $0xc] sm:$0xf]
    %v213 = vld [vmem:[%s2 + $0x10] sm:$0xf]
    %v214 = vld [vmem:[%s2 + $0x14] sm:$0xf]
    %v215 = vld [vmem:[%s2 + $0x18] sm:$0xf]
    %v216 = vld [vmem:[%s2 + $0x1c] sm:$0xf]
    %v217 = vld [vmem:[%s2 + $0x20] sm:$0xf]
    %v218 = vld [vmem:[%s2 + $0x24] sm:$0xf]
    %v219 = vld [vmem:[%s2 + $0x28] sm:$0xf]
    %v220 = vld [vmem:[%s2 + $0x2c] sm:$0xf]
    %v221 = vld [vmem:[%s2 + $0x30] sm:$0xf]
    %v222 = vld [vmem:[%s2 + $0x34] sm:$0xf]
    %v223 = vld [vmem:[%s2 + $0x38] sm:$0xf]
    %v224 = vld [vmem:[%s2 + $0x3c] sm:$0xf]
    %v225 = vpack.c.bf16 %v202, %v201
    %v226 = vpack.c.bf16 %v204, %v203
    %v227 = vpack.c.bf16 %v206, %v205
    %v228 = vpack.c.bf16 %v208, %v207
    %v229 = vld [vmem:[%s3] sm:$0xff]
    %v230 = vld [vmem:[%s3 + $0x8] sm:$0xff]
    %v231 = vld [vmem:[%s3 + $0x10] sm:$0xff]
    %v232 = vld [vmem:[%s3 + $0x18] sm:$0xff]
    %v233 = vld [vmem:[%s3 + $0x20] sm:$0xff]
    %v234 = vld [vmem:[%s3 + $0x28] sm:$0xff]
    %v235 = vld [vmem:[%s3 + $0x30] sm:$0xff]
    %v236 = vld [vmem:[%s3 + $0x38] sm:$0xff]
    %v237 = vld [vmem:[%s3 + $0x40] sm:$0xff]
    %v238 = vld [vmem:[%s3 + $0x48] sm:$0xff]
    %v239 = vld [vmem:[%s3 + $0x50] sm:$0xff]
    %v240 = vld [vmem:[%s3 + $0x58] sm:$0xff]
    %v241 = vld [vmem:[%s3 + $0x60] sm:$0xff]
    %v242 = vld [vmem:[%s3 + $0x68] sm:$0xff]
    %v243 = vld [vmem:[%s3 + $0x70] sm:$0xff]
    %v244 = vld [vmem:[%s3 + $0x78] sm:$0xff]
    %246 = vset.pattern.permute.xlu0 0
    %247 = vperm.xlu0 %246, %v229
    %v248 = vpop.permute.xlu0 %247
    %251 = vset.pattern.permute.xlu0 0
    %252 = vperm.xlu0 %251, %v230
    %v253 = vpop.permute.xlu0 %252
    %256 = vset.pattern.permute.xlu0 0
    %257 = vperm.xlu0 %256, %v231
    %v258 = vpop.permute.xlu0 %257
    %261 = vset.pattern.permute.xlu0 0
    %262 = vperm.xlu0 %261, %v232
    %v263 = vpop.permute.xlu0 %262
    %266 = vset.pattern.permute.xlu0 0
    %267 = vperm.xlu0 %266, %v233
    %v268 = vpop.permute.xlu0 %267
    %271 = vset.pattern.permute.xlu0 0
    %272 = vperm.xlu0 %271, %v234
    %v273 = vpop.permute.xlu0 %272
    %276 = vset.pattern.permute.xlu0 0
    %277 = vperm.xlu0 %276, %v235
    %v278 = vpop.permute.xlu0 %277
    %281 = vset.pattern.permute.xlu0 0
    %282 = vperm.xlu0 %281, %v236
    %v283 = vpop.permute.xlu0 %282
    %286 = vset.pattern.permute.xlu0 0
    %287 = vperm.xlu0 %286, %v237
    %v288 = vpop.permute.xlu0 %287
    %291 = vset.pattern.permute.xlu0 0
    %292 = vperm.xlu0 %291, %v238
    %v293 = vpop.permute.xlu0 %292
    %296 = vset.pattern.permute.xlu0 0
    %297 = vperm.xlu0 %296, %v239
    %v298 = vpop.permute.xlu0 %297
    %301 = vset.pattern.permute.xlu0 0
    %302 = vperm.xlu0 %301, %v240
    %v303 = vpop.permute.xlu0 %302
    %306 = vset.pattern.permute.xlu0 0
    %307 = vperm.xlu0 %306, %v241
    %v308 = vpop.permute.xlu0 %307
    %311 = vset.pattern.permute.xlu0 0
    %312 = vperm.xlu0 %311, %v242
    %v313 = vpop.permute.xlu0 %312
    %316 = vset.pattern.permute.xlu0 0
    %317 = vperm.xlu0 %316, %v243
    %v318 = vpop.permute.xlu0 %317
    %321 = vset.pattern.permute.xlu0 0
    %322 = vperm.xlu0 %321, %v244
    %v323 = vpop.permute.xlu0 %322
    %v341 = vunpack.c.l.b16 %v209
    %v342 = vunpack.c.l.b16 %v210
    %v343 = vunpack.c.l.b16 %v211
    %v344 = vunpack.c.l.b16 %v212
    %v345 = vunpack.c.l.b16 %v213
    %v346 = vunpack.c.l.b16 %v214
    %v347 = vunpack.c.l.b16 %v215
    %v348 = vunpack.c.l.b16 %v216
    %v349 = vunpack.c.l.b16 %v217
    %v350 = vunpack.c.l.b16 %v218
    %v351 = vunpack.c.l.b16 %v219
    %v352 = vunpack.c.l.b16 %v220
    %v353 = vunpack.c.l.b16 %v221
    %v354 = vunpack.c.l.b16 %v222
    %v355 = vunpack.c.l.b16 %v223
    %v356 = vunpack.c.l.b16 %v224
    %v357 = vpack.c.b16 %v342, %v341
    %v358 = vpack.c.b16 %v344, %v343
    %v359 = vpack.c.b16 %v346, %v345
    %v360 = vpack.c.b16 %v348, %v347
    %v361 = vpack.c.b16 %v350, %v349
    %v362 = vpack.c.b16 %v352, %v351
    %v363 = vpack.c.b16 %v354, %v353
    %v364 = vpack.c.b16 %v356, %v355
    %vm365 = vcmask 523264
    %v367 = vsel %vm365, %v357, 0
    %v370 = vsel %vm365, %v358, 0
    %v373 = vsel %vm365, %v359, 0
    %v376 = vsel %vm365, %v360, 0
    %v379 = vsel %vm365, %v361, 0
    %v382 = vsel %vm365, %v362, 0
    %v385 = vsel %vm365, %v363, 0
    %v388 = vsel %vm365, %v364, 0
    %390 = vmatprep.subr.bf16.mxu0 0
    %391 = vmatpush1.bf16.msra.mxu0 0
    %392 = vmatprep.subr.bf16.mxu0 0
    %393 = vmatpush1.bf16.msra.mxu0 0
    %394 = vmatprep.subr.bf16.mxu0 0
    %395 = vmatpush1.bf16.msra.mxu0 0
    %396 = vmatprep.subr.bf16.mxu0 0
    %397 = vmatpush1.bf16.msra.mxu0 0
    %398 = vmatprep.subr.bf16.mxu0 0
    %399 = vmatpush1.bf16.msra.mxu0 %v228
    %400 = vmatprep.subr.bf16.mxu0 0
    %401 = vmatpush1.bf16.msra.mxu0 %v227
    %402 = vmatprep.subr.bf16.mxu0 0
    %403 = vmatpush1.bf16.msra.mxu0 %v226
    %404 = vmatprep.subr.bf16.mxu0 0
    %405 = vmatpush1.bf16.msra.mxu0 %v225
    %406 = vmatprep.subr.bf16.mxu0 0
    %407 = vmatpush2.bf16.msra.mxu0 0
    %408 = vmatprep.subr.bf16.mxu0 0
    %409 = vmatpush2.bf16.msra.mxu0 0
    %410 = vmatprep.subr.bf16.mxu0 0
    %411 = vmatpush2.bf16.msra.mxu0 0
    %412 = vmatprep.subr.bf16.mxu0 0
    %413 = vmatpush2.bf16.msra.mxu0 0
    %414 = vmatprep.subr.bf16.mxu0 0
    %415 = vmatpush2.bf16.msra.mxu0 0
    %416 = vmatprep.subr.bf16.mxu0 0
    %417 = vmatpush2.bf16.msra.mxu0 0
    %418 = vmatprep.subr.bf16.mxu0 0
    %419 = vmatpush2.bf16.msra.mxu0 0
    %420 = vmatprep.subr.bf16.mxu0 0
    %421 = vmatpush2.bf16.msra.mxu0 0
    %422 = vmatprep.mubr.bf16.mxu0 0
    %423 = vmatmul.mubr.bf16.gmra.mxu0 %v367
    %v424 = vpop.f32.mrf.mxu0
    %v425 = vadd.f32 %v248, %v424
    %v426 = vpop.f32.mrf.mxu0
    %v427 = vpop.f32.mrf.mxu0
    %v428 = vadd.f32 %v253, %v427
    %v429 = vpop.f32.mrf.mxu0
    %430 = vmatprep.mubr.bf16.mxu0 0
    %431 = vmatmul.mubr.bf16.gmra.mxu0 %v370
    %v432 = vpop.f32.mrf.mxu0
    %v433 = vadd.f32 %v258, %v432
    %v434 = vpop.f32.mrf.mxu0
    %v435 = vpop.f32.mrf.mxu0
    %v436 = vadd.f32 %v263, %v435
    %v437 = vpop.f32.mrf.mxu0
    %438 = vmatprep.mubr.bf16.mxu0 0
    %439 = vmatmul.mubr.bf16.gmra.mxu0 %v373
    %v440 = vpop.f32.mrf.mxu0
    %v441 = vadd.f32 %v268, %v440
    %v442 = vpop.f32.mrf.mxu0
    %v443 = vpop.f32.mrf.mxu0
    %v444 = vadd.f32 %v273, %v443
    %v445 = vpop.f32.mrf.mxu0
    %446 = vmatprep.mubr.bf16.mxu0 0
    %447 = vmatmul.mubr.bf16.gmra.mxu0 %v376
    %v448 = vpop.f32.mrf.mxu0
    %v449 = vadd.f32 %v278, %v448
    %v450 = vpop.f32.mrf.mxu0
    %v451 = vpop.f32.mrf.mxu0
    %v452 = vadd.f32 %v283, %v451
    %v453 = vpop.f32.mrf.mxu0
    %454 = vmatprep.mubr.bf16.mxu0 0
    %455 = vmatmul.mubr.bf16.gmra.mxu0 %v379
    %v456 = vpop.f32.mrf.mxu0
    %v457 = vadd.f32 %v288, %v456
    %v458 = vpop.f32.mrf.mxu0
    %v459 = vpop.f32.mrf.mxu0
    %v460 = vadd.f32 %v293, %v459
    %v461 = vpop.f32.mrf.mxu0
    %462 = vmatprep.mubr.bf16.mxu0 0
    %463 = vmatmul.mubr.bf16.gmra.mxu0 %v382
    %v464 = vpop.f32.mrf.mxu0
    %v465 = vadd.f32 %v298, %v464
    %v466 = vpop.f32.mrf.mxu0
    %v467 = vpop.f32.mrf.mxu0
    %v468 = vadd.f32 %v303, %v467
    %v469 = vpop.f32.mrf.mxu0
    %470 = vmatprep.mubr.bf16.mxu0 0
    %471 = vmatmul.mubr.bf16.gmra.mxu0 %v385
    %v472 = vpop.f32.mrf.mxu0
    %v473 = vadd.f32 %v308, %v472
    %v474 = vpop.f32.mrf.mxu0
    %v475 = vpop.f32.mrf.mxu0
    %v476 = vadd.f32 %v313, %v475
    %v477 = vpop.f32.mrf.mxu0
    %478 = vmatprep.mubr.bf16.mxu0 0
    %479 = vmatmul.mubr.bf16.gmra.mxu0 %v388
    %v480 = vpop.f32.mrf.mxu0
    %v481 = vadd.f32 %v318, %v480
    %v482 = vpop.f32.mrf.mxu0
    %v483 = vpop.f32.mrf.mxu0
    %v484 = vadd.f32 %v323, %v483
    %v485 = vpop.f32.mrf.mxu0
    %486 = vdwg.mxu0
    %vm487 = vcmp.gt.f32.partialorder %v425, 0.0
    %vm488 = vcmp.gt.f32.partialorder %v428, 0.0
    %vm489 = vcmp.gt.f32.partialorder %v433, 0.0
    %vm490 = vcmp.gt.f32.partialorder %v436, 0.0
    %vm491 = vcmp.gt.f32.partialorder %v441, 0.0
    %vm492 = vcmp.gt.f32.partialorder %v444, 0.0
    %vm493 = vcmp.gt.f32.partialorder %v449, 0.0
    %vm494 = vcmp.gt.f32.partialorder %v452, 0.0
    %vm495 = vcmp.gt.f32.partialorder %v457, 0.0
    %vm496 = vcmp.gt.f32.partialorder %v460, 0.0
    %vm497 = vcmp.gt.f32.partialorder %v465, 0.0
    %vm498 = vcmp.gt.f32.partialorder %v468, 0.0
    %vm499 = vcmp.gt.f32.partialorder %v473, 0.0
    %vm500 = vcmp.gt.f32.partialorder %v476, 0.0
    %vm501 = vcmp.gt.f32.partialorder %v481, 0.0
    %vm502 = vcmp.gt.f32.partialorder %v484, 0.0
    %v503 = vmin.f32 %v425, 0.0
    %v504 = vmin.f32 %v428, 0.0
    %v505 = vmin.f32 %v433, 0.0
    %v506 = vmin.f32 %v436, 0.0
    %v507 = vmin.f32 %v441, 0.0
    %v508 = vmin.f32 %v444, 0.0
    %v509 = vmin.f32 %v449, 0.0
    %v510 = vmin.f32 %v452, 0.0
    %v511 = vmin.f32 %v457, 0.0
    %v512 = vmin.f32 %v460, 0.0
    %v513 = vmin.f32 %v465, 0.0
    %v514 = vmin.f32 %v468, 0.0
    %v515 = vmin.f32 %v473, 0.0
    %v516 = vmin.f32 %v476, 0.0
    %v517 = vmin.f32 %v481, 0.0
    %v518 = vmin.f32 %v484, 0.0
    %v519 = vmul.f32 %v503, 1.442695
    %v520 = vpow.pop %v519
    %v521 = vmul.f32 %v504, 1.442695
    %v522 = vpow.pop %v521
    %v523 = vmul.f32 %v505, 1.442695
    %v524 = vpow.pop %v523
    %v525 = vmul.f32 %v506, 1.442695
    %v526 = vpow.pop %v525
    %v527 = vmul.f32 %v507, 1.442695
    %v528 = vpow.pop %v527
    %v529 = vmul.f32 %v508, 1.442695
    %v530 = vpow.pop %v529
    %v531 = vmul.f32 %v509, 1.442695
    %v532 = vpow.pop %v531
    %v533 = vmul.f32 %v510, 1.442695
    %v534 = vpow.pop %v533
    %v535 = vmul.f32 %v511, 1.442695
    %v536 = vpow.pop %v535
    %v537 = vmul.f32 %v512, 1.442695
    %v538 = vpow.pop %v537
    %v539 = vmul.f32 %v513, 1.442695
    %v540 = vpow.pop %v539
    %v541 = vmul.f32 %v514, 1.442695
    %v542 = vpow.pop %v541
    %v543 = vmul.f32 %v515, 1.442695
    %v544 = vpow.pop %v543
    %v545 = vmul.f32 %v516, 1.442695
    %v546 = vpow.pop %v545
    %v547 = vmul.f32 %v517, 1.442695
    %v548 = vpow.pop %v547
    %v549 = vmul.f32 %v518, 1.442695
    %v550 = vpow.pop %v549
    %v551 = vsub.f32 %v520, 1.0
    %v552 = vsub.f32 %v522, 1.0
    %v553 = vsub.f32 %v524, 1.0
    %v554 = vsub.f32 %v526, 1.0
    %v555 = vsub.f32 %v528, 1.0
    %v556 = vsub.f32 %v530, 1.0
    %v557 = vsub.f32 %v532, 1.0
    %v558 = vsub.f32 %v534, 1.0
    %v559 = vsub.f32 %v536, 1.0
    %v560 = vsub.f32 %v538, 1.0
    %v561 = vsub.f32 %v540, 1.0
    %v562 = vsub.f32 %v542, 1.0
    %v563 = vsub.f32 %v544, 1.0
    %v564 = vsub.f32 %v546, 1.0
    %v565 = vsub.f32 %v548, 1.0
    %v566 = vsub.f32 %v550, 1.0
    %v567 = vsel %vm487, %v425, %v551
    %v568 = vsel %vm488, %v428, %v552
    %v569 = vsel %vm489, %v433, %v553
    %v570 = vsel %vm490, %v436, %v554
    %v571 = vsel %vm491, %v441, %v555
    %v572 = vsel %vm492, %v444, %v556
    %v573 = vsel %vm493, %v449, %v557
    %v574 = vsel %vm494, %v452, %v558
    %v575 = vsel %vm495, %v457, %v559
    %v576 = vsel %vm496, %v460, %v560
    %v577 = vsel %vm497, %v465, %v561
    %v578 = vsel %vm498, %v468, %v562
    %v579 = vsel %vm499, %v473, %v563
    %v580 = vsel %vm500, %v476, %v564
    %v581 = vsel %vm501, %v481, %v565
    %v582 = vsel %vm502, %v484, %v566
    %v583 = vld [vmem:[%s4] sm:$0xff]
    %584 = vmatprep.subr.mxu0 0.0
    %585 = vmatpush1.msra.mxu0 %v582
    %586 = vmatprep.subr.mxu0 0.0
    %587 = vmatpush1.msra.mxu0 %v581
    %588 = vmatprep.subr.mxu0 0.0
    %589 = vmatpush1.msra.mxu0 %v580
    %590 = vmatprep.subr.mxu0 0.0
    %591 = vmatpush1.msra.mxu0 %v579
    %592 = vmatprep.subr.mxu0 0.0
    %593 = vmatpush1.msra.mxu0 %v578
    %594 = vmatprep.subr.mxu0 0.0
    %595 = vmatpush1.msra.mxu0 %v577
    %596 = vmatprep.subr.mxu0 0.0
    %597 = vmatpush1.msra.mxu0 %v576
    %598 = vmatprep.subr.mxu0 0.0
    %599 = vmatpush1.msra.mxu0 %v575
    %600 = vmatprep.subr.mxu0 0.0
    %601 = vmatpush1.msra.mxu0 %v574
    %602 = vmatprep.subr.mxu0 0.0
    %603 = vmatpush1.msra.mxu0 %v573
    %604 = vmatprep.subr.mxu0 0.0
    %605 = vmatpush1.msra.mxu0 %v572
    %606 = vmatprep.subr.mxu0 0.0
    %607 = vmatpush1.msra.mxu0 %v571
    %608 = vmatprep.subr.mxu0 0.0
    %609 = vmatpush1.msra.mxu0 %v570
    %610 = vmatprep.subr.mxu0 0.0
    %611 = vmatpush1.msra.mxu0 %v569
    %612 = vmatprep.subr.mxu0 0.0
    %613 = vmatpush1.msra.mxu0 %v568
    %614 = vmatprep.subr.mxu0 0.0
    %615 = vmatpush1.msra.mxu0 %v567
    %616 = vmatprep.subr.mxu0 0.0
    %617 = vmatpush2.msra.mxu0 0.0
    %618 = vmatprep.subr.mxu0 0.0
    %619 = vmatpush2.msra.mxu0 0.0
    %620 = vmatprep.subr.mxu0 0.0
    %621 = vmatpush2.msra.mxu0 0.0
    %622 = vmatprep.subr.mxu0 0.0
    %623 = vmatpush2.msra.mxu0 0.0
    %624 = vmatprep.subr.mxu0 0.0
    %625 = vmatpush2.msra.mxu0 0.0
    %626 = vmatprep.subr.mxu0 0.0
    %627 = vmatpush2.msra.mxu0 0.0
    %628 = vmatprep.subr.mxu0 0.0
    %629 = vmatpush2.msra.mxu0 0.0
    %630 = vmatprep.subr.mxu0 0.0
    %631 = vmatpush2.msra.mxu0 0.0
    %632 = vmatprep.subr.mxu0 0.0
    %633 = vmatpush2.msra.mxu0 0.0
    %634 = vmatprep.subr.mxu0 0.0
    %635 = vmatpush2.msra.mxu0 0.0
    %636 = vmatprep.subr.mxu0 0.0
    %637 = vmatpush2.msra.mxu0 0.0
    %638 = vmatprep.subr.mxu0 0.0
    %639 = vmatpush2.msra.mxu0 0.0
    %640 = vmatprep.subr.mxu0 0.0
    %641 = vmatpush2.msra.mxu0 0.0
    %642 = vmatprep.subr.mxu0 0.0
    %643 = vmatpush2.msra.mxu0 0.0
    %644 = vmatprep.subr.mxu0 0.0
    %645 = vmatpush2.msra.mxu0 0.0
    %646 = vmatprep.subr.mxu0 0.0
    %647 = vmatpush2.msra.mxu0 0.0
    %648 = vmatprep.mubr.f32.mxu0 0.0
    %649 = vmatmul.mubr.f32.gmra.mxu0 %v583
    %v650 = vpop.f32.mrf.mxu0
    %v651 = vadd.f32 0.0, %v650
    %v652 = vpop.f32.mrf.mxu0
    %653 = vdwg.mxu0
    %654 = vst [vmem:[#allocation2] sm:$0x1] %v651
    // Predicated region
    $region22: #{tpu_custom_call.1} parent=1 // pred_check
      _
    $region23: #{tpu_custom_call.1} parent=1 // pred_check_branch
      %656 = sbr.rel (0) target = $region25
    $region24: #{tpu_custom_call.1} parent=1 // pred_region
      %s658 = ssub.s32 16, 16
      %659 = vsyncadd [#allocation3], %s658
      %s661 = sshll.u32 [#allocation2], 4
      %s662 = int_to_ptr.vmem [resolvable:$true] %s661
      %664 = dma.vmem_to_hbm [thread:$0]  %s662, 16, %s5, [#allocation3]
    $region25: #{tpu_custom_call.1} parent=1 // pred_fallthru
      _
    // Predicated region
    $region26: #{tpu_custom_call.1} parent=1 // pred_check
      _
    $region27: #{tpu_custom_call.1} parent=1 // pred_check_branch
      %666 = sbr.rel (0) target = $region29
    $region28: #{tpu_custom_call.1} parent=1 // pred_region
      %667 = dma.done [#allocation3], 16
    $region29: #{tpu_custom_call.1} parent=1 // pred_fallthru
      _
    %668 = vsyncpa [#allocation3], 1

</llo_original>
